<compile_context>
chip_gen: v6e
topology: v6e:2x2x1
jax: 0.10.0
libtpu: 0.0.40
codegen_flags: <defaults>
</compile_context>

<pallas_src>
import functools
import math

import jax
import jax.numpy as jnp
from jax import lax
from jax.experimental import pallas as pl
from jax.experimental.pallas import tpu as pltpu


def _round_up(x, m):
    return ((x + m - 1) // m) * m


def _time_mlm_head_kernel(x_ref, wd_ref, bd_ref, g_ref, b_ref, wdec_ref,
                          bdec_ref, o_ref, h_scratch, *, eps):
    # x_ref:     (tm, H)   row tile of hidden states (stored dtype)
    # wd_ref:    (H, H)    dense weight, PyTorch [out, in] layout
    # bd_ref:    (1, H)    dense bias
    # g_ref:     (1, H)    LayerNorm gamma
    # b_ref:     (1, H)    LayerNorm beta
    # wdec_ref:  (tn, H)   decoder weight tile, PyTorch [out, in] layout
    # bdec_ref:  (1, tn)   decoder bias tile
    # o_ref:     (tm, tn)  output tile
    # h_scratch: (tm, H)   f32 scratch holding dense+GELU+LN result

    # Recompute h only when entering a new row tile (first T-tile).
    @pl.when(pl.program_id(1) == 0)
    def _():
        # dense: x @ Wd^T  (contract on in-features axis of both operands)
        h = lax.dot_general(
            x_ref[...], wd_ref[...],
            dimension_numbers=(((1,), (1,)), ((), ())),
            preferred_element_type=jnp.float32,
        )
        h = h + bd_ref[...].astype(jnp.float32)

        # exact GELU (erf form, matches PyTorch ACT2FN["gelu"])
        h = 0.5 * h * (1.0 + lax.erf(h * (1.0 / math.sqrt(2.0))))

        # LayerNorm over the hidden axis (f32 statistics)
        mean = jnp.mean(h, axis=-1, keepdims=True)
        var = jnp.mean(jnp.square(h - mean), axis=-1, keepdims=True)
        h = (h - mean) * lax.rsqrt(var + eps)
        h = h * g_ref[...].astype(jnp.float32) + b_ref[...].astype(jnp.float32)

        h_scratch[...] = h

    # decoder tile: h @ Wdec^T + bias  (feed MXU in the stored weight dtype)
    out = lax.dot_general(
        h_scratch[...].astype(wdec_ref.dtype), wdec_ref[...],
        dimension_numbers=(((1,), (1,)), ((), ())),
        preferred_element_type=jnp.float32,
    )
    out = out + bdec_ref[...].astype(jnp.float32)
    o_ref[...] = out.astype(o_ref.dtype)


def _estimate_vmem_bytes(tm, tn, H, x_dtype, w_dtype, out_dtype):
    nb = lambda dt: jnp.dtype(dt).itemsize
    x_buf = 2 * tm * H * nb(x_dtype)          # double-buffered row tile
    wd_buf = 2 * H * H * nb(w_dtype)          # dense weight
    small = 2 * (3 * H + tn) * 4              # biases / gamma / beta
    wdec_buf = 2 * tn * H * nb(w_dtype)       # streamed decoder weight tile
    out_buf = 2 * tm * tn * nb(out_dtype)     # output tile
    scratch = tm * H * 4                      # f32 h scratch
    return x_buf + wd_buf + small + wdec_buf + out_buf + scratch


def time_mlm_head(hidden_states, params, *, eps=1e-12, tm=256, tn=512):
    """hidden_states: [B, S, H] -> [B, S, T]"""
    B, S, H = hidden_states.shape
    Wd, bd, gamma, beta, Wdec, bdec = (
        params["dense_w"], params["dense_b"], params["ln_g"], params["ln_b"],
        params["dec_w"], params["dec_b"])
    T = Wdec.shape[0]

    M = B * S
    x2d = hidden_states.reshape(M, H)

    # Clamp tiles to the problem size while respecting the (8, 128) layout
    # constraint. On v7x prefer a tm that leaves >= 4 row tiles so both
    # TensorCores get work along the "parallel" axis.
    tm = min(tm, _round_up(M, 8))
    tn = min(tn, _round_up(T, 128))

    # Biases / LN params as (1, H) / (1, T) lane-aligned rows (no HBM transpose
    # of the weights: they stay in PyTorch [out, in] layout).
    bd2 = bd.reshape(1, H)
    g2 = gamma.reshape(1, H)
    b2 = beta.reshape(1, H)
    bdec2 = bdec.reshape(1, T)

    grid = (pl.cdiv(M, tm), pl.cdiv(T, tn))

    vmem_limit = _estimate_vmem_bytes(tm, tn, H, x2d.dtype, Wd.dtype,
                                      hidden_states.dtype)
    vmem_limit = min(128 * 1024 * 1024,
                     max(32 * 1024 * 1024, int(1.5 * vmem_limit)))

    kernel = functools.partial(_time_mlm_head_kernel, eps=eps)

    out2d = pl.pallas_call(
        kernel,
        out_shape=jax.ShapeDtypeStruct((M, T), hidden_states.dtype),
        grid_spec=pltpu.PrefetchScalarGridSpec(
            num_scalar_prefetch=0,
            grid=grid,
            in_specs=[
                pl.BlockSpec((tm, H), lambda i, j: (i, 0)),   # x row tile
                pl.BlockSpec((H, H), lambda i, j: (0, 0)),    # dense weight
                pl.BlockSpec((1, H), lambda i, j: (0, 0)),    # dense bias
                pl.BlockSpec((1, H), lambda i, j: (0, 0)),    # ln gamma
                pl.BlockSpec((1, H), lambda i, j: (0, 0)),    # ln beta
                pl.BlockSpec((tn, H), lambda i, j: (j, 0)),   # decoder weight tile
                pl.BlockSpec((1, tn), lambda i, j: (0, j)),   # decoder bias tile
            ],
            out_specs=pl.BlockSpec((tm, tn), lambda i, j: (i, j)),
            scratch_shapes=[pltpu.VMEM((tm, H), jnp.float32)],
        ),
        compiler_params=pltpu.CompilerParams(
            dimension_semantics=("parallel", "arbitrary"),
            vmem_limit_bytes=vmem_limit,
        ),
    )(x2d, Wd, bd2, g2, b2, Wdec, bdec2)

    return out2d.reshape(B, S, T)


def _reference(hidden_states, params, eps=1e-12):
    """Plain-JAX reference for correctness check."""
    x = hidden_states.astype(jnp.float32)
    h = x @ params["dense_w"].T.astype(jnp.float32) + params["dense_b"]
    h = 0.5 * h * (1.0 + lax.erf(h / math.sqrt(2.0)))
    mean = jnp.mean(h, axis=-1, keepdims=True)
    var = jnp.mean(jnp.square(h - mean), axis=-1, keepdims=True)
    h = (h - mean) * lax.rsqrt(var + eps)
    h = h * params["ln_g"] + params["ln_b"]
    return h @ params["dec_w"].T.astype(jnp.float32) + params["dec_b"]


if __name__ == "__main__":
    # small config: batch=2, seq=8, hidden_size=128, time_num=256
    B, S, H, T = 2, 8, 128, 256
    eps = 1e-12

    key = jax.random.PRNGKey(0)
    k_x, k_wd, k_bd, k_wdec = jax.random.split(key, 4)

    hidden_states = jax.random.normal(k_x, (B, S, H), dtype=jnp.float32)

    params = {
        "dense_w": jax.random.normal(k_wd, (H, H), dtype=jnp.float32) * 0.02,
        "dense_b": jax.random.normal(k_bd, (H,), dtype=jnp.float32) * 0.02,
        "ln_g": jnp.ones((H,), dtype=jnp.float32),
        "ln_b": jnp.zeros((H,), dtype=jnp.float32),
        "dec_w": jax.random.normal(k_wdec, (T, H), dtype=jnp.float32) * 0.02,
        "dec_b": jnp.zeros((T,), dtype=jnp.float32),  # self.bias (init zeros)
    }

    out = time_mlm_head(hidden_states, params, eps=eps)
    out = jax.block_until_ready(out)

    ref = _reference(hidden_states, params, eps=eps)
    assert out.shape == (B, S, T), out.shape
    assert jnp.allclose(out, ref, atol=1e-4, rtol=1e-4), \
        float(jnp.max(jnp.abs(out - ref)))

    print("KERNEL_OK")
</pallas_src>

<mosaic_0001>
module attributes {stable_mosaic.version = 11 : i64} {
  func.func @_time_mlm_head_kernel(%arg0: i32, %arg1: i32, %arg2: memref<16x128xf32, #tpu.memory_space<vmem>>, %arg3: memref<128x128xf32, #tpu.memory_space<vmem>>, %arg4: memref<1x128xf32, #tpu.memory_space<vmem>>, %arg5: memref<1x128xf32, #tpu.memory_space<vmem>>, %arg6: memref<1x128xf32, #tpu.memory_space<vmem>>, %arg7: memref<256x128xf32, #tpu.memory_space<vmem>>, %arg8: memref<1x256xf32, #tpu.memory_space<vmem>>, %arg9: memref<16x256xf32, #tpu.memory_space<vmem>>, %arg10: memref<16x128xf32, #tpu.memory_space<vmem>>) attributes {dimension_semantics = [#tpu.dimension_semantics<parallel>, #tpu.dimension_semantics<arbitrary>], iteration_bounds = array<i64: 1, 1>, scalar_prefetch = 0 : i64, scratch_operands = 1 : i64, tpu.core_type = #tpu.core_type<tc>, window_params = [{transform_indices = @transform_0, window_bounds = array<i64: 16, 128>}, {pipeline_mode = #tpu.pipeline_mode<synchronous>, transform_indices = @transform_1, window_bounds = array<i64: 128, 128>}, {pipeline_mode = #tpu.pipeline_mode<synchronous>, transform_indices = @transform_2, window_bounds = array<i64: 1, 128>}, {pipeline_mode = #tpu.pipeline_mode<synchronous>, transform_indices = @transform_3, window_bounds = array<i64: 1, 128>}, {pipeline_mode = #tpu.pipeline_mode<synchronous>, transform_indices = @transform_4, window_bounds = array<i64: 1, 128>}, {transform_indices = @transform_5, window_bounds = array<i64: 256, 128>}, {transform_indices = @transform_6, window_bounds = array<i64: 1, 256>}, {transform_indices = @transform_7, window_bounds = array<i64: 16, 256>}]} {
    %c0_i32 = arith.constant 0 : i32
    %0 = arith.cmpi eq, %arg1, %c0_i32 : i32
    %1 = arith.extui %0 : i1 to i32
    %c0_i32_0 = arith.constant 0 : i32
    %2 = arith.cmpi ne, %1, %c0_i32_0 : i32
    scf.if %2 {
      %c0_8 = arith.constant 0 : index
      %c0_9 = arith.constant 0 : index
      %10 = vector.load %arg2[%c0_8, %c0_9] : memref<16x128xf32, #tpu.memory_space<vmem>>, vector<16x128xf32>
      %c0_10 = arith.constant 0 : index
      %c0_11 = arith.constant 0 : index
      %11 = vector.load %arg3[%c0_10, %c0_11] : memref<128x128xf32, #tpu.memory_space<vmem>>, vector<128x128xf32>
      %cst_12 = arith.constant dense<0.000000e+00> : vector<16x128xf32>
      %12 = tpu.matmul %10, %11, %cst_12 {dimension_numbers = #tpu.dot_dimension_numbers<[1], [1], [0], [0], [0, 0, 1, 0], [], []>} : vector<16x128xf32>, vector<128x128xf32>, vector<16x128xf32> -> vector<16x128xf32>
      %c0_13 = arith.constant 0 : index
      %c0_14 = arith.constant 0 : index
      %13 = vector.load %arg4[%c0_13, %c0_14] : memref<1x128xf32, #tpu.memory_space<vmem>>, vector<1x128xf32>
      %14 = vector.broadcast %13 : vector<1x128xf32> to vector<16x128xf32>
      %15 = arith.addf %12, %14 : vector<16x128xf32>
      %cst_15 = arith.constant 5.000000e-01 : f32
      %16 = vector.broadcast %cst_15 : f32 to vector<16x128xf32>
      %17 = arith.mulf %16, %15 : vector<16x128xf32>
      %cst_16 = arith.constant 0.707106769 : f32
      %18 = vector.broadcast %cst_16 : f32 to vector<16x128xf32>
      %19 = arith.mulf %15, %18 : vector<16x128xf32>
      %20 = math.erf %19 : vector<16x128xf32>
      %cst_17 = arith.constant 1.000000e+00 : f32
      %21 = vector.broadcast %cst_17 : f32 to vector<16x128xf32>
      %22 = arith.addf %21, %20 : vector<16x128xf32>
      %23 = arith.mulf %17, %22 : vector<16x128xf32>
      %cst_18 = arith.constant dense<0.000000e+00> : vector<16xf32>
      %24 = vector.multi_reduction <add>, %23, %cst_18 [1] : vector<16x128xf32> to vector<16xf32>
      %25 = vector.shape_cast %24 : vector<16xf32> to vector<16x1xf32>
      %cst_19 = arith.constant 1.280000e+02 : f32
      %26 = vector.broadcast %cst_19 : f32 to vector<16x1xf32>
      %27 = arith.divf %25, %26 : vector<16x1xf32>
      %28 = vector.broadcast %27 : vector<16x1xf32> to vector<16x128xf32>
      %29 = arith.subf %23, %28 : vector<16x128xf32>
      %30 = arith.mulf %29, %29 : vector<16x128xf32>
      %cst_20 = arith.constant dense<0.000000e+00> : vector<16xf32>
      %31 = vector.multi_reduction <add>, %30, %cst_20 [1] : vector<16x128xf32> to vector<16xf32>
      %32 = vector.shape_cast %31 : vector<16xf32> to vector<16x1xf32>
      %cst_21 = arith.constant 1.280000e+02 : f32
      %33 = vector.broadcast %cst_21 : f32 to vector<16x1xf32>
      %34 = arith.divf %32, %33 : vector<16x1xf32>
      %35 = vector.broadcast %27 : vector<16x1xf32> to vector<16x128xf32>
      %36 = arith.subf %23, %35 : vector<16x128xf32>
      %cst_22 = arith.constant 9.99999996E-13 : f32
      %37 = vector.broadcast %cst_22 : f32 to vector<16x1xf32>
      %38 = arith.addf %34, %37 : vector<16x1xf32>
      %39 = math.rsqrt %38 : vector<16x1xf32>
      %40 = vector.broadcast %39 : vector<16x1xf32> to vector<16x128xf32>
      %41 = arith.mulf %36, %40 : vector<16x128xf32>
      %c0_23 = arith.constant 0 : index
      %c0_24 = arith.constant 0 : index
      %42 = vector.load %arg5[%c0_23, %c0_24] : memref<1x128xf32, #tpu.memory_space<vmem>>, vector<1x128xf32>
      %43 = vector.broadcast %42 : vector<1x128xf32> to vector<16x128xf32>
      %44 = arith.mulf %41, %43 : vector<16x128xf32>
      %c0_25 = arith.constant 0 : index
      %c0_26 = arith.constant 0 : index
      %45 = vector.load %arg6[%c0_25, %c0_26] : memref<1x128xf32, #tpu.memory_space<vmem>>, vector<1x128xf32>
      %46 = vector.broadcast %45 : vector<1x128xf32> to vector<16x128xf32>
      %47 = arith.addf %44, %46 : vector<16x128xf32>
      %c0_27 = arith.constant 0 : index
      %c0_28 = arith.constant 0 : index
      %48 = vector.load %arg10[%c0_27, %c0_28] : memref<16x128xf32, #tpu.memory_space<vmem>>, vector<16x128xf32>
      tpu.vector_store %arg10[%c0_27, %c0_28], %47 {strides = array<i32>} : memref<16x128xf32, #tpu.memory_space<vmem>>, vector<16x128xf32>,
    } else {
    }
    %c0 = arith.constant 0 : index
    %c0_1 = arith.constant 0 : index
    %3 = vector.load %arg10[%c0, %c0_1] : memref<16x128xf32, #tpu.memory_space<vmem>>, vector<16x128xf32>
    %c0_2 = arith.constant 0 : index
    %c0_3 = arith.constant 0 : index
    %4 = vector.load %arg7[%c0_2, %c0_3] : memref<256x128xf32, #tpu.memory_space<vmem>>, vector<256x128xf32>
    %cst = arith.constant dense<0.000000e+00> : vector<16x256xf32>
    %5 = tpu.matmul %3, %4, %cst {dimension_numbers = #tpu.dot_dimension_numbers<[1], [1], [0], [0], [0, 0, 1, 0], [], []>} : vector<16x128xf32>, vector<256x128xf32>, vector<16x256xf32> -> vector<16x256xf32>
    %c0_4 = arith.constant 0 : index
    %c0_5 = arith.constant 0 : index
    %6 = vector.load %arg8[%c0_4, %c0_5] : memref<1x256xf32, #tpu.memory_space<vmem>>, vector<1x256xf32>
    %7 = vector.broadcast %6 : vector<1x256xf32> to vector<16x256xf32>
    %8 = arith.addf %5, %7 : vector<16x256xf32>
    %c0_6 = arith.constant 0 : index
    %c0_7 = arith.constant 0 : index
    %9 = vector.load %arg9[%c0_6, %c0_7] : memref<16x256xf32, #tpu.memory_space<vmem>>, vector<16x256xf32>
    tpu.vector_store %arg9[%c0_6, %c0_7], %8 {strides = array<i32>} : memref<16x256xf32, #tpu.memory_space<vmem>>, vector<16x256xf32>,
    return
  }
  func.func @transform_0(%arg0: i32, %arg1: i32) -> (i32, i32) {
    %c0_i32 = arith.constant 0 : i32
    %c0_i32_0 = arith.constant 0 : i32
    return %arg0, %c0_i32 : i32, i32
  }
  func.func @transform_1(%arg0: i32, %arg1: i32) -> (i32, i32) {
    %c0_i32 = arith.constant 0 : i32
    %c0_i32_0 = arith.constant 0 : i32
    %c0_i32_1 = arith.constant 0 : i32
    return %c0_i32, %c0_i32_0 : i32, i32
  }
  func.func @transform_2(%arg0: i32, %arg1: i32) -> (i32, i32) {
    %c0_i32 = arith.constant 0 : i32
    %c0_i32_0 = arith.constant 0 : i32
    %c0_i32_1 = arith.constant 0 : i32
    return %c0_i32, %c0_i32_0 : i32, i32
  }
  func.func @transform_3(%arg0: i32, %arg1: i32) -> (i32, i32) {
    %c0_i32 = arith.constant 0 : i32
    %c0_i32_0 = arith.constant 0 : i32
    %c0_i32_1 = arith.constant 0 : i32
    return %c0_i32, %c0_i32_0 : i32, i32
  }
  func.func @transform_4(%arg0: i32, %arg1: i32) -> (i32, i32) {
    %c0_i32 = arith.constant 0 : i32
    %c0_i32_0 = arith.constant 0 : i32
    %c0_i32_1 = arith.constant 0 : i32
    return %c0_i32, %c0_i32_0 : i32, i32
  }
  func.func @transform_5(%arg0: i32, %arg1: i32) -> (i32, i32) {
    %c0_i32 = arith.constant 0 : i32
    %c0_i32_0 = arith.constant 0 : i32
    return %arg1, %c0_i32 : i32, i32
  }
  func.func @transform_6(%arg0: i32, %arg1: i32) -> (i32, i32) {
    %c0_i32 = arith.constant 0 : i32
    %c0_i32_0 = arith.constant 0 : i32
    return %c0_i32, %arg1 : i32, i32
  }
  func.func @transform_7(%arg0: i32, %arg1: i32) -> (i32, i32) {
    %c0_i32 = arith.constant 0 : i32
    return %arg0, %arg1 : i32, i32
  }
}

</mosaic_0001>

<llo_original>
// kernel: tpu_custom_call.1
$region0: #{tpu_custom_call.1}
  #allocation0 [shape = 'u32[]', space=smem, size = 0x4, offset = 0x4, fixed_abs, tag = 'smem constant byte address 0x4 - core index']
  #allocation1 [shape = 'u32[144,128]{1,0:T(1,128)}', space=vmem, size = 0x12000, scoped, tag = 'internal scratch']
  #allocation2 [shape = 'f32[16,128]{1,0:T(8,128)}', space=vmem, size = 0x2000, scoped, tag = 'scratch operand']
  %s0 = inlined_call_operand.hbm [shape: f32[16,128], index: 0, kind: input, shape index: {}]
  %s1 = inlined_call_operand.hbm [shape: f32[128,128], index: 1, kind: input, shape index: {}]
  %s2 = inlined_call_operand.vmem [shape: f32[1,128], index: 2, kind: input, shape index: {}]
  %s3 = inlined_call_operand.vmem [shape: f32[1,128], index: 3, kind: input, shape index: {}]
  %s4 = inlined_call_operand.vmem [shape: f32[1,128], index: 4, kind: input, shape index: {}]
  %s5 = inlined_call_operand.hbm [shape: f32[256,128], index: 5, kind: input, shape index: {}]
  %s6 = inlined_call_operand.vmem [shape: f32[1,256], index: 6, kind: input, shape index: {}]
  %s7 = inlined_call_operand.hbm [shape: f32[16,256], index: 7, kind: output, shape index: {}]
  %s8 = sld [smem:[#allocation0]]
  $region54: #{tpu_custom_call.1} parent=0
    _
  %s10 = ssub.s32 1, %s8
  %s11 = scalar_select 0, %s10, %s8
  $region1: #{tpu_custom_call.1} parent=0
    #allocation3 [shape = 'u8[8192]{0}', space=vmem, size = 0x2000, scoped, tag = 'input window, operand 0, single buffered']
    #allocation4 [shape = 's32[1]{0}', space=sflag, size = 0x4, scoped, tag = 'scoped memory for tpu_custom_call.1']
    #allocation5 [shape = 's32[1]{0}', space=sflag, size = 0x4, scoped, tag = 'scoped memory for tpu_custom_call.1']
    #allocation6 [shape = 'u8[65536]{0}', space=vmem, size = 0x10000, scoped, tag = 'input window, operand 1, single buffered']
    #allocation7 [shape = 's32[1]{0}', space=sflag, size = 0x4, scoped, tag = 'scoped memory for tpu_custom_call.1']
    #allocation8 [shape = 'u8[131072]{0}', space=vmem, size = 0x20000, scoped, tag = 'input window, operand 5, single buffered']
    #allocation9 [shape = 'u8[16384]{0}', space=vmem, size = 0x4000, scoped, tag = 'output window, operand 0, single buffered']
    %12 = vsyncpa [#allocation4], 0
    %13 = vsyncpa [#allocation7], 0
    %14 = vsyncpa [#allocation5], 0
    // Predicated region
    $region2: #{tpu_custom_call.1} parent=1 // pred_check
      _
    $region3: #{tpu_custom_call.1} parent=1 // pred_check_branch
      %16 = sbr.rel (0) target = $region5
    $region4: #{tpu_custom_call.1} parent=1 // pred_region
      %s18 = ssub.s32 256, 256
      %19 = vsyncadd [#allocation4], %s18
      %s20 = sshll.u32 [#allocation3], 4
      %s21 = int_to_ptr.vmem [resolvable:$true] %s20
      %26 = dma.hbm_to_vmem [thread:$0]  %s0, 256, %s21, [#allocation4], 128, 128, 8
    $region5: #{tpu_custom_call.1} parent=1 // pred_fallthru
      _
    // Predicated region
    $region6: #{tpu_custom_call.1} parent=1 // pred_check
      _
    $region7: #{tpu_custom_call.1} parent=1 // pred_check_branch
      %28 = sbr.rel (0) target = $region9
    $region8: #{tpu_custom_call.1} parent=1 // pred_region
      %s30 = ssub.s32 2048, 2048
      %31 = vsyncadd [#allocation7], %s30
      %s32 = sshll.u32 [#allocation6], 4
      %s33 = int_to_ptr.vmem [resolvable:$true] %s32
      %38 = dma.hbm_to_vmem [thread:$0]  %s1, 2048, %s33, [#allocation7], 128, 128, 8
    $region9: #{tpu_custom_call.1} parent=1 // pred_fallthru
      _
    // Predicated region
    $region10: #{tpu_custom_call.1} parent=1 // pred_check
      _
    $region11: #{tpu_custom_call.1} parent=1 // pred_check_branch
      %40 = sbr.rel (0) target = $region13
    $region12: #{tpu_custom_call.1} parent=1 // pred_region
      _
    $region13: #{tpu_custom_call.1} parent=1 // pred_fallthru
      _
    // Predicated region
    $region14: #{tpu_custom_call.1} parent=1 // pred_check
      _
    $region15: #{tpu_custom_call.1} parent=1 // pred_check_branch
      %42 = sbr.rel (0) target = $region17
    $region16: #{tpu_custom_call.1} parent=1 // pred_region
      _
    $region17: #{tpu_custom_call.1} parent=1 // pred_fallthru
      _
    // Predicated region
    $region18: #{tpu_custom_call.1} parent=1 // pred_check
      _
    $region19: #{tpu_custom_call.1} parent=1 // pred_check_branch
      %44 = sbr.rel (0) target = $region21
    $region20: #{tpu_custom_call.1} parent=1 // pred_region
      _
    $region21: #{tpu_custom_call.1} parent=1 // pred_fallthru
      _
    // Predicated region
    $region22: #{tpu_custom_call.1} parent=1 // pred_check
      _
    $region23: #{tpu_custom_call.1} parent=1 // pred_check_branch
      %46 = sbr.rel (0) target = $region25
    $region24: #{tpu_custom_call.1} parent=1 // pred_region
      %s48 = ssub.s32 4096, 4096
      %49 = vsyncadd [#allocation7], %s48
      %s50 = sshll.u32 [#allocation8], 4
      %s51 = int_to_ptr.vmem [resolvable:$true] %s50
      %56 = dma.hbm_to_vmem [thread:$0]  %s5, 4096, %s51, [#allocation7], 128, 128, 8
    $region25: #{tpu_custom_call.1} parent=1 // pred_fallthru
      _
    // Predicated region
    $region26: #{tpu_custom_call.1} parent=1 // pred_check
      _
    $region27: #{tpu_custom_call.1} parent=1 // pred_check_branch
      %58 = sbr.rel (0) target = $region29
    $region28: #{tpu_custom_call.1} parent=1 // pred_region
      _
    $region29: #{tpu_custom_call.1} parent=1 // pred_fallthru
      _
    // Predicated region
    $region30: #{tpu_custom_call.1} parent=1 // pred_check
      _
    $region31: #{tpu_custom_call.1} parent=1 // pred_check_branch
      %60 = sbr.rel (0) target = $region33
    $region32: #{tpu_custom_call.1} parent=1 // pred_region
      %61 = dma.done [#allocation4], 256
    $region33: #{tpu_custom_call.1} parent=1 // pred_fallthru
      _
    // Predicated region
    $region34: #{tpu_custom_call.1} parent=1 // pred_check
      _
    $region35: #{tpu_custom_call.1} parent=1 // pred_check_branch
      %63 = sbr.rel (0) target = $region37
    $region36: #{tpu_custom_call.1} parent=1 // pred_region
      %64 = dma.done [#allocation7], 2048
    $region37: #{tpu_custom_call.1} parent=1 // pred_fallthru
      _
    // Predicated region
    $region38: #{tpu_custom_call.1} parent=1 // pred_check
      _
    $region39: #{tpu_custom_call.1} parent=1 // pred_check_branch
      %66 = sbr.rel (0) target = $region41
    $region40: #{tpu_custom_call.1} parent=1 // pred_region
      %67 = dma.done [#allocation7], 4096
    $region41: #{tpu_custom_call.1} parent=1 // pred_fallthru
      _
    %p68 = scmp.eq.s32.totalorder 0, 0
    // Predicated region
    $region42: #{tpu_custom_call.1} parent=1 // pred_check
      %p69 = pneg %p68
    $region43: #{tpu_custom_call.1} parent=1 // pred_check_branch
      %71 = sbr.rel (%p69) target = $region45
    $region44: #{tpu_custom_call.1} parent=1 // pred_region
      %v72 = vld [vmem:[#allocation3] sm:$0xff]
      %v73 = vld [vmem:[#allocation3 + $0x8] sm:$0xff]
      %v74 = vld [vmem:[#allocation6] sm:$0xff]
      %v75 = vld [vmem:[#allocation6 + $0x8] sm:$0xff]
      %v76 = vld [vmem:[#allocation6 + $0x10] sm:$0xff]
      %v77 = vld [vmem:[#allocation6 + $0x18] sm:$0xff]
      %v78 = vld [vmem:[#allocation6 + $0x20] sm:$0xff]
      %v79 = vld [vmem:[#allocation6 + $0x28] sm:$0xff]
      %v80 = vld [vmem:[#allocation6 + $0x30] sm:$0xff]
      %v81 = vld [vmem:[#allocation6 + $0x38] sm:$0xff]
      %v82 = vld [vmem:[#allocation6 + $0x40] sm:$0xff]
      %v83 = vld [vmem:[#allocation6 + $0x48] sm:$0xff]
      %v84 = vld [vmem:[#allocation6 + $0x50] sm:$0xff]
      %v85 = vld [vmem:[#allocation6 + $0x58] sm:$0xff]
      %v86 = vld [vmem:[#allocation6 + $0x60] sm:$0xff]
      %v87 = vld [vmem:[#allocation6 + $0x68] sm:$0xff]
      %v88 = vld [vmem:[#allocation6 + $0x70] sm:$0xff]
      %v89 = vld [vmem:[#allocation6 + $0x78] sm:$0xff]
      %v90 = vld [vmem:[%s2] sm:$0x1]
      %v92 = vlaneseq
      %v93 = vshrl.u32 %v92, 7
      %v94 = vsub.s32 0, %v93
      %v95 = vrot.slane %v90, %v94
      %97 = vmatprep.subr.mxu0 0.0
      %98 = vmatpush1.xpose.msra.mxu0 %v89
      %99 = vmatprep.subr.mxu0 0.0
      %100 = vmatpush1.xpose.msra.mxu0 %v88
      %101 = vmatprep.subr.mxu0 0.0
      %102 = vmatpush1.xpose.msra.mxu0 %v87
      %103 = vmatprep.subr.mxu0 0.0
      %104 = vmatpush1.xpose.msra.mxu0 %v86
      %105 = vmatprep.subr.mxu0 0.0
      %106 = vmatpush1.xpose.msra.mxu0 %v85
      %107 = vmatprep.subr.mxu0 0.0
      %108 = vmatpush1.xpose.msra.mxu0 %v84
      %109 = vmatprep.subr.mxu0 0.0
      %110 = vmatpush1.xpose.msra.mxu0 %v83
      %111 = vmatprep.subr.mxu0 0.0
      %112 = vmatpush1.xpose.msra.mxu0 %v82
      %113 = vmatprep.subr.mxu0 0.0
      %114 = vmatpush1.xpose.msra.mxu0 %v81
      %115 = vmatprep.subr.mxu0 0.0
      %116 = vmatpush1.xpose.msra.mxu0 %v80
      %117 = vmatprep.subr.mxu0 0.0
      %118 = vmatpush1.xpose.msra.mxu0 %v79
      %119 = vmatprep.subr.mxu0 0.0
      %120 = vmatpush1.xpose.msra.mxu0 %v78
      %121 = vmatprep.subr.mxu0 0.0
      %122 = vmatpush1.xpose.msra.mxu0 %v77
      %123 = vmatprep.subr.mxu0 0.0
      %124 = vmatpush1.xpose.msra.mxu0 %v76
      %125 = vmatprep.subr.mxu0 0.0
      %126 = vmatpush1.xpose.msra.mxu0 %v75
      %127 = vmatprep.subr.mxu0 0.0
      %128 = vmatpush1.xpose.msra.mxu0 %v74
      %129 = vmatprep.subr.mxu0 0.0
      %130 = vmatpush2.xpose.msra.mxu0 0.0
      %131 = vmatprep.subr.mxu0 0.0
      %132 = vmatpush2.xpose.msra.mxu0 0.0
      %133 = vmatprep.subr.mxu0 0.0
      %134 = vmatpush2.xpose.msra.mxu0 0.0
      %135 = vmatprep.subr.mxu0 0.0
      %136 = vmatpush2.xpose.msra.mxu0 0.0
      %137 = vmatprep.subr.mxu0 0.0
      %138 = vmatpush2.xpose.msra.mxu0 0.0
      %139 = vmatprep.subr.mxu0 0.0
      %140 = vmatpush2.xpose.msra.mxu0 0.0
      %141 = vmatprep.subr.mxu0 0.0
      %142 = vmatpush2.xpose.msra.mxu0 0.0
      %143 = vmatprep.subr.mxu0 0.0
      %144 = vmatpush2.xpose.msra.mxu0 0.0
      %145 = vmatprep.subr.mxu0 0.0
      %146 = vmatpush2.xpose.msra.mxu0 0.0
      %147 = vmatprep.subr.mxu0 0.0
      %148 = vmatpush2.xpose.msra.mxu0 0.0
      %149 = vmatprep.subr.mxu0 0.0
      %150 = vmatpush2.xpose.msra.mxu0 0.0
      %151 = vmatprep.subr.mxu0 0.0
      %152 = vmatpush2.xpose.msra.mxu0 0.0
      %153 = vmatprep.subr.mxu0 0.0
      %154 = vmatpush2.xpose.msra.mxu0 0.0
      %155 = vmatprep.subr.mxu0 0.0
      %156 = vmatpush2.xpose.msra.mxu0 0.0
      %157 = vmatprep.subr.mxu0 0.0
      %158 = vmatpush2.xpose.msra.mxu0 0.0
      %159 = vmatprep.subr.mxu0 0.0
      %160 = vmatpush2.xpose.msra.mxu0 0.0
      %161 = vmatprep.mubr.f32.mxu0 0.0
      %162 = vmatmul.mubr.f32.gmra.mxu0 %v72
      %v163 = vpop.f32.mrf.mxu0
      %v164 = vadd.f32 %v95, %v163
      %v165 = vpop.f32.mrf.mxu0
      %166 = vmatprep.mubr.f32.mxu0 0.0
      %167 = vmatmul.mubr.f32.gmra.mxu0 %v73
      %v168 = vpop.f32.mrf.mxu0
      %v169 = vadd.f32 %v95, %v168
      %v170 = vpop.f32.mrf.mxu0
      %171 = vdwg.mxu0
      %v172 = vmul.f32 %v164, 0.5
      %v173 = vmul.f32 %v169, 0.5
      %v174 = vmul.f32 %v164, 0.70710677
      %v175 = vmul.f32 %v169, 0.70710677
      %v176 = verf.f32.pop %v174
      %v177 = verf.f32.pop %v175
      %v178 = vadd.f32 %v176, 1.0
      %v179 = vadd.f32 %v177, 1.0
      %v180 = vmul.f32 %v172, %v178
      %v181 = vmul.f32 %v173, %v179
      %182 = vadd.xlane.f32.xlu0 %v180
      %v183 = vpop.xlane.xlu0 %182
      %184 = vadd.xlane.f32.xlu0 %v181
      %v185 = vpop.xlane.xlu0 %184
      %v186 = vrcp.pop 128.0
      %v187 = vmul.f32 %v183, %v186
      %v188 = vmul.f32 %v185, %v186
      %v189 = vsub.f32 %v180, %v187
      %v190 = vsub.f32 %v181, %v188
      %v191 = vmul.f32 %v189, %v189
      %v192 = vmul.f32 %v190, %v190
      %193 = vadd.xlane.f32.xlu0 %v191
      %v194 = vpop.xlane.xlu0 %193
      %195 = vadd.xlane.f32.xlu0 %v192
      %v196 = vpop.xlane.xlu0 %195
      %v197 = vmul.f32 %v194, %v186
      %v198 = vmul.f32 %v196, %v186
      %v199 = vadd.f32 %v197, 1e-12
      %v200 = vadd.f32 %v198, 1e-12
      %v201 = vrsqrt.pop %v199
      %v202 = vrsqrt.pop %v200
      %v203 = vmul.f32 %v189, %v201
      %v204 = vmul.f32 %v190, %v202
      %v205 = vld [vmem:[%s3] sm:$0x1]
      %v207 = vlaneseq
      %v208 = vshrl.u32 %v207, 7
      %v209 = vsub.s32 0, %v208
      %v210 = vrot.slane %v205, %v209
      %v212 = vmul.f32 %v203, %v210
      %v213 = vmul.f32 %v204, %v210
      %v214 = vld [vmem:[%s4] sm:$0x1]
      %v216 = vlaneseq
      %v217 = vshrl.u32 %v216, 7
      %v218 = vsub.s32 0, %v217
      %v219 = vrot.slane %v214, %v218
      %v221 = vadd.f32 %v212, %v219
      %v222 = vadd.f32 %v213, %v219
      %223 = vst [vmem:[#allocation2] sm:$0xff] %v221
      %224 = vst [vmem:[#allocation2 + $0x8] sm:$0xff] %v222
    $region45: #{tpu_custom_call.1} parent=1 // pred_fallthru
      _
    %v225 = vld [vmem:[#allocation2] sm:$0xff]
    %v226 = vld [vmem:[#allocation2 + $0x8] sm:$0xff]
    %v227 = vld [vmem:[#allocation8] sm:$0xff]
    %v228 = vld [vmem:[#allocation8 + $0x8] sm:$0xff]
    %v229 = vld [vmem:[#allocation8 + $0x10] sm:$0xff]
    %v230 = vld [vmem:[#allocation8 + $0x18] sm:$0xff]
    %v231 = vld [vmem:[#allocation8 + $0x20] sm:$0xff]
    %v232 = vld [vmem:[#allocation8 + $0x28] sm:$0xff]
    %v233 = vld [vmem:[#allocation8 + $0x30] sm:$0xff]
    %v234 = vld [vmem:[#allocation8 + $0x38] sm:$0xff]
    %v235 = vld [vmem:[#allocation8 + $0x40] sm:$0xff]
    %v236 = vld [vmem:[#allocation8 + $0x48] sm:$0xff]
    %v237 = vld [vmem:[#allocation8 + $0x50] sm:$0xff]
    %v238 = vld [vmem:[#allocation8 + $0x58] sm:$0xff]
    %v239 = vld [vmem:[#allocation8 + $0x60] sm:$0xff]
    %v240 = vld [vmem:[#allocation8 + $0x68] sm:$0xff]
    %v241 = vld [vmem:[#allocation8 + $0x70] sm:$0xff]
    %v242 = vld [vmem:[#allocation8 + $0x78] sm:$0xff]
    %v243 = vld [vmem:[#allocation8 + $0x80] sm:$0xff]
    %v244 = vld [vmem:[#allocation8 + $0x88] sm:$0xff]
    %v245 = vld [vmem:[#allocation8 + $0x90] sm:$0xff]
    %v246 = vld [vmem:[#allocation8 + $0x98] sm:$0xff]
    %v247 = vld [vmem:[#allocation8 + $0xa0] sm:$0xff]
    %v248 = vld [vmem:[#allocation8 + $0xa8] sm:$0xff]
    %v249 = vld [vmem:[#allocation8 + $0xb0] sm:$0xff]
    %v250 = vld [vmem:[#allocation8 + $0xb8] sm:$0xff]
    %v251 = vld [vmem:[#allocation8 + $0xc0] sm:$0xff]
    %v252 = vld [vmem:[#allocation8 + $0xc8] sm:$0xff]
    %v253 = vld [vmem:[#allocation8 + $0xd0] sm:$0xff]
    %v254 = vld [vmem:[#allocation8 + $0xd8] sm:$0xff]
    %v255 = vld [vmem:[#allocation8 + $0xe0] sm:$0xff]
    %v256 = vld [vmem:[#allocation8 + $0xe8] sm:$0xff]
    %v257 = vld [vmem:[#allocation8 + $0xf0] sm:$0xff]
    %v258 = vld [vmem:[#allocation8 + $0xf8] sm:$0xff]
    %v259 = vld [vmem:[%s6] sm:$0x3]
    %v261 = vlaneseq
    %v262 = vshrl.u32 %v261, 7
    %v263 = vsub.s32 0, %v262
    %v264 = vrot.slane %v259, %v263
    %v265 = vlaneseq
    %v266 = vshrl.u32 %v265, 7
    %v267 = vsub.s32 1, %v266
    %v268 = vrot.slane %v259, %v267
    %271 = vmatprep.subr.mxu0 0.0
    %272 = vmatpush1.xpose.msra.mxu0 %v242
    %273 = vmatprep.subr.mxu0 0.0
    %274 = vmatpush1.xpose.msra.mxu0 %v241
    %275 = vmatprep.subr.mxu0 0.0
    %276 = vmatpush1.xpose.msra.mxu0 %v240
    %277 = vmatprep.subr.mxu0 0.0
    %278 = vmatpush1.xpose.msra.mxu0 %v239
    %279 = vmatprep.subr.mxu0 0.0
    %280 = vmatpush1.xpose.msra.mxu0 %v238
    %281 = vmatprep.subr.mxu0 0.0
    %282 = vmatpush1.xpose.msra.mxu0 %v237
    %283 = vmatprep.subr.mxu0 0.0
    %284 = vmatpush1.xpose.msra.mxu0 %v236
    %285 = vmatprep.subr.mxu0 0.0
    %286 = vmatpush1.xpose.msra.mxu0 %v235
    %287 = vmatprep.subr.mxu0 0.0
    %288 = vmatpush1.xpose.msra.mxu0 %v234
    %289 = vmatprep.subr.mxu0 0.0
    %290 = vmatpush1.xpose.msra.mxu0 %v233
    %291 = vmatprep.subr.mxu0 0.0
    %292 = vmatpush1.xpose.msra.mxu0 %v232
    %293 = vmatprep.subr.mxu0 0.0
    %294 = vmatpush1.xpose.msra.mxu0 %v231
    %295 = vmatprep.subr.mxu0 0.0
    %296 = vmatpush1.xpose.msra.mxu0 %v230
    %297 = vmatprep.subr.mxu0 0.0
    %298 = vmatpush1.xpose.msra.mxu0 %v229
    %299 = vmatprep.subr.mxu0 0.0
    %300 = vmatpush1.xpose.msra.mxu0 %v228
    %301 = vmatprep.subr.mxu0 0.0
    %302 = vmatpush1.xpose.msra.mxu0 %v227
    %303 = vmatprep.subr.mxu0 0.0
    %304 = vmatpush2.xpose.msra.mxu0 %v258
    %305 = vmatprep.subr.mxu0 0.0
    %306 = vmatpush2.xpose.msra.mxu0 %v257
    %307 = vmatprep.subr.mxu0 0.0
    %308 = vmatpush2.xpose.msra.mxu0 %v256
    %309 = vmatprep.subr.mxu0 0.0
    %310 = vmatpush2.xpose.msra.mxu0 %v255
    %311 = vmatprep.subr.mxu0 0.0
    %312 = vmatpush2.xpose.msra.mxu0 %v254
    %313 = vmatprep.subr.mxu0 0.0
    %314 = vmatpush2.xpose.msra.mxu0 %v253
    %315 = vmatprep.subr.mxu0 0.0
    %316 = vmatpush2.xpose.msra.mxu0 %v252
    %317 = vmatprep.subr.mxu0 0.0
    %318 = vmatpush2.xpose.msra.mxu0 %v251
    %319 = vmatprep.subr.mxu0 0.0
    %320 = vmatpush2.xpose.msra.mxu0 %v250
    %321 = vmatprep.subr.mxu0 0.0
    %322 = vmatpush2.xpose.msra.mxu0 %v249
    %323 = vmatprep.subr.mxu0 0.0
    %324 = vmatpush2.xpose.msra.mxu0 %v248
    %325 = vmatprep.subr.mxu0 0.0
    %326 = vmatpush2.xpose.msra.mxu0 %v247
    %327 = vmatprep.subr.mxu0 0.0
    %328 = vmatpush2.xpose.msra.mxu0 %v246
    %329 = vmatprep.subr.mxu0 0.0
    %330 = vmatpush2.xpose.msra.mxu0 %v245
    %331 = vmatprep.subr.mxu0 0.0
    %332 = vmatpush2.xpose.msra.mxu0 %v244
    %333 = vmatprep.subr.mxu0 0.0
    %334 = vmatpush2.xpose.msra.mxu0 %v243
    %335 = vmatprep.mubr.f32.mxu0 0.0
    %336 = vmatmul.mubr.f32.gmra.mxu0 %v225
    %v337 = vpop.f32.mrf.mxu0
    %v338 = vadd.f32 %v264, %v337
    %v339 = vpop.f32.mrf.mxu0
    %v340 = vadd.f32 %v268, %v339
    %341 = vmatprep.mubr.f32.mxu0 0.0
    %342 = vmatmul.mubr.f32.gmra.mxu0 %v226
    %v343 = vpop.f32.mrf.mxu0
    %v344 = vadd.f32 %v264, %v343
    %v345 = vpop.f32.mrf.mxu0
    %v346 = vadd.f32 %v268, %v345
    %347 = vdwg.mxu0
    %348 = vst [vmem:[#allocation9] sm:$0xff] %v338
    %349 = vst [vmem:[#allocation9 + $0x8] sm:$0xff] %v340
    %350 = vst [vmem:[#allocation9 + $0x10] sm:$0xff] %v344
    %351 = vst [vmem:[#allocation9 + $0x18] sm:$0xff] %v346
    // Predicated region
    $region46: #{tpu_custom_call.1} parent=1 // pred_check
      _
    $region47: #{tpu_custom_call.1} parent=1 // pred_check_branch
      %353 = sbr.rel (0) target = $region49
    $region48: #{tpu_custom_call.1} parent=1 // pred_region
      %s355 = ssub.s32 512, 512
      %356 = vsyncadd [#allocation5], %s355
      %s357 = sshll.u32 [#allocation9], 4
      %s358 = int_to_ptr.vmem [resolvable:$true] %s357
      %363 = dma.vmem_to_hbm [thread:$0]  %s358, 512, %s7, [#allocation5], 256, 256, 16
    $region49: #{tpu_custom_call.1} parent=1 // pred_fallthru
      _
    // Predicated region
    $region50: #{tpu_custom_call.1} parent=1 // pred_check
      _
    $region51: #{tpu_custom_call.1} parent=1 // pred_check_branch
      %365 = sbr.rel (0) target = $region53
    $region52: #{tpu_custom_call.1} parent=1 // pred_region
      %366 = dma.done [#allocation5], 512
    $region53: #{tpu_custom_call.1} parent=1 // pred_fallthru
      _
    %367 = vsyncpa [#allocation4], 1
    %368 = vsyncpa [#allocation7], 1
    %369 = vsyncpa [#allocation5], 1

</llo_original>
